<compile_context>
chip_gen: v6e
topology: v6e:2x2x1
jax: 0.10.0
libtpu: 0.0.40
codegen_flags: <defaults>
</compile_context>

<pallas_src>
import jax
import jax.numpy as jnp
from jax.experimental import pallas as pl
from jax.experimental.pallas import tpu as pltpu


def _make_fused_clip_kernel(c_ref: float):
    """Kernel for one (row-tile, column-tile) logits tile.

    Inputs are pre-normalized; the image operand is pre-scaled by 1/T, so the
    logits tile = img_op @ txt_op^T already includes the temperature and every
    logit is bounded above by C = 1/T. A single exp(logits - C) feeds both
    directional logsumexps.
    """
    C = float(c_ref)  # Python float -> jaxpr literal, NOT a captured constant.

    def kernel(img_ref, txt_ref, row_lse_ref, col_part_ref, row_acc):
        j = pl.program_id(1)
        nj = pl.num_programs(1)

        @pl.when(j == 0)
        def _init():
            row_acc[...] = jnp.zeros_like(row_acc)

        # (Tq, Tk) logits tile: bf16 operands on the MXU, f32 accumulation;
        # the transpose is folded into the contraction (last-dim / last-dim).
        logits = jax.lax.dot_general(
            img_ref[...], txt_ref[...],
            dimension_numbers=(((1,), (1,)), ((), ())),
            preferred_element_type=jnp.float32)

        p = jnp.exp(logits - C)                                   # (Tq, Tk)

        # image->text: accumulate row sums across column tiles (reduction axis).
        row_acc[...] += jnp.sum(p, axis=-1, keepdims=True)        # (Tq, 1)

        # text->image: per-(row-tile, column-tile) partial column sums
        # (lane-dense (1, Tk) store), merged across row tiles in the wrapper.
        col_part_ref[...] = jnp.sum(p, axis=0, keepdims=True)     # (1, Tk)

        @pl.when(j == nj - 1)
        def _finalize():
            row_lse_ref[...] = C + jnp.log(row_acc[...])

    return kernel


def _pick_row_tile(batch: int) -> int:
    # Bias toward 128 result rows (matches v5e MXU geometry, keeps the f32
    # logits intermediate small); fall back to the full batch.
    for t in (128, 64, 32, 16, 8):
        if batch % t == 0:
            return t
    return batch


def _pick_col_tile(batch: int) -> int:
    # Large, lane-aligned column (reduction) tile to amortize per-step grid
    # overhead; with Tq=128 a Tk=512 f32 logits tile is ~64 vregs.
    for t in (512, 256, 128):
        if batch % t == 0:
            return t
    return batch


def _fused_clip_lse(img_op, txt_op, c_ref: float, tq: int, tk: int):
    """Returns (row_lse (B,1) f32, column partial sums (nb_q,1,B) f32)."""
    B, D = img_op.shape
    assert txt_op.shape == (B, D)
    assert B % tq == 0 and (tq == B or tq % 8 == 0), (B, tq)
    assert B % tk == 0 and (tk == B or tk % 128 == 0), (B, tk)
    nb_q, nb_k = B // tq, B // tk

    return pl.pallas_call(
        _make_fused_clip_kernel(c_ref),
        out_shape=(
            jax.ShapeDtypeStruct((B, 1), jnp.float32),        # row-wise LSE
            jax.ShapeDtypeStruct((nb_q, 1, B), jnp.float32),  # column partials
        ),
        grid_spec=pltpu.PrefetchScalarGridSpec(
            num_scalar_prefetch=0,
            grid=(nb_q, nb_k),                  # rows parallel, columns reduce
            in_specs=[
                pl.BlockSpec((tq, D), lambda i, j: (i, 0)),   # image row tile
                pl.BlockSpec((tk, D), lambda i, j: (j, 0)),   # text column tile
            ],
            out_specs=[
                pl.BlockSpec((tq, 1), lambda i, j: (i, 0)),
                pl.BlockSpec((None, 1, tk), lambda i, j: (i, 0, j)),
            ],
            scratch_shapes=[pltpu.VMEM((tq, 1), jnp.float32)],
        ),
        compiler_params=pltpu.CompilerParams(
            dimension_semantics=("parallel", "arbitrary"),
            vmem_limit_bytes=32 * 1024 * 1024),   # portable to v7x's 64 MiB
    )(img_op, txt_op)


def custom_clip_loss(image_features, text_features, custom_features=None,
                     temperature: float = 0.07,
                     block_rows=None, block_cols=None):
    """Pallas equivalent of CustomCLIPLoss.forward. Returns dict of scalars."""
    del custom_features  # unused, mirrors the PyTorch signature
    assert image_features.shape == text_features.shape
    B, D = image_features.shape
    inv_temp = 1.0 / float(temperature)
    # TODO(synk): the fixed softmax reference C = 1/T relies on normalized
    # features and a CLIP-range temperature (T >= ~0.025 keeps exp(logits - C)
    # inside f32 range); for much smaller T, reinstate an online running max.

    # Row-wise L2 normalization, done once in f32 (matches x / x.norm(dim=-1)).
    # TODO(synk): no eps, like the PyTorch module — an all-zero row yields nan.
    def _normalize(x):
        x = x.astype(jnp.float32)
        return x * jax.lax.rsqrt(jnp.sum(x * x, axis=-1, keepdims=True))

    img_n = _normalize(image_features)
    txt_n = _normalize(text_features)

    # Fold 1/temperature into the image operand; cast both MXU operands to
    # bf16 once (accumulation happens in f32 inside the kernel).
    img_op = (img_n * inv_temp).astype(jnp.bfloat16)
    txt_op = txt_n.astype(jnp.bfloat16)

    # Diagonal logits (labels == arange): one tiny O(B*D) elementwise reduce,
    # computed from the same bf16-rounded operands the kernel sees.
    diag = jnp.sum(img_op.astype(jnp.float32) * txt_op.astype(jnp.float32),
                   axis=-1)                                          # (B,)

    tq = int(block_rows) if block_rows is not None else _pick_row_tile(B)
    tk = int(block_cols) if block_cols is not None else _pick_col_tile(B)

    row_lse, col_part = _fused_clip_lse(img_op, txt_op, inv_temp, tq, tk)

    lse_row = row_lse[:, 0]                                          # (B,)
    lse_col = inv_temp + jnp.log(jnp.sum(col_part, axis=(0, 1)))     # (B,)

    loss_i = jnp.mean(lse_row - diag)      # cross_entropy(logits,   arange)
    loss_t = jnp.mean(lse_col - diag)      # cross_entropy(logits.T, arange)
    clip_loss = 0.5 * (loss_i + loss_t)
    return {"clip_loss": clip_loss, "total_loss": clip_loss}


def _reference_clip_loss(image_features, text_features, temperature=0.07):
    """Pure-JAX reference mirroring the PyTorch module (sanity check)."""
    img = image_features / jnp.linalg.norm(image_features, axis=-1, keepdims=True)
    txt = text_features / jnp.linalg.norm(text_features, axis=-1, keepdims=True)
    logits = img @ txt.T / temperature
    B = logits.shape[0]
    labels = jnp.arange(B)
    log_p_i = jax.nn.log_softmax(logits, axis=-1)
    log_p_t = jax.nn.log_softmax(logits.T, axis=-1)
    loss_i = -jnp.mean(log_p_i[labels, labels])
    loss_t = -jnp.mean(log_p_t[labels, labels])
    return (loss_i + loss_t) / 2.0


if __name__ == "__main__":
    key = jax.random.PRNGKey(0)
    k1, k2, k3, k4 = jax.random.split(key, 4)

    # Small case consistent with the module: (batch=32, embed_dim=128);
    # single-tile grid, auto tile pick.
    B1, D1 = 32, 128
    img1 = jax.random.normal(k1, (B1, D1), dtype=jnp.float32)
    txt1 = jax.random.normal(k2, (B1, D1), dtype=jnp.float32)
    ref1 = _reference_clip_loss(img1, txt1, temperature=0.07)
    out1 = custom_clip_loss(img1, txt1, temperature=0.07)
    got1 = jax.block_until_ready(out1["clip_loss"])

    # Tiled case: (batch=256, embed_dim=64) with Tq=64, Tk=128 -> 4x2 grid;
    # exercises init / accumulate / finalize, the reduction axis, and the
    # JAX-side merge of the per-row-tile column partials.
    B2, D2 = 256, 64
    img2 = jax.random.normal(k3, (B2, D2), dtype=jnp.float32)
    txt2 = jax.random.normal(k4, (B2, D2), dtype=jnp.float32)
    ref2 = _reference_clip_loss(img2, txt2, temperature=0.07)
    out2 = custom_clip_loss(img2, txt2, temperature=0.07,
                            block_rows=64, block_cols=128)
    got2 = jax.block_until_ready(out2["clip_loss"])
    out2_auto = custom_clip_loss(img2, txt2, temperature=0.07)
    got2_auto = jax.block_until_ready(out2_auto["clip_loss"])

    # bf16 MXU operands (f32 accumulation) -> loosened tolerance vs f32 ref.
    assert jnp.allclose(got1, ref1, rtol=2e-2, atol=2e-2), (got1, ref1)
    assert jnp.allclose(got2, ref2, rtol=2e-2, atol=2e-2), (got2, ref2)
    assert jnp.allclose(got2, got2_auto, rtol=1e-3, atol=1e-3), (got2, got2_auto)
    assert jnp.allclose(out1["total_loss"], got1)
    print("KERNEL_OK")
</pallas_src>

<mosaic_0001>
module attributes {stable_mosaic.version = 11 : i64} {
  func.func @kernel(%arg0: i32, %arg1: i32, %arg2: memref<32x128xbf16, #tpu.memory_space<vmem>>, %arg3: memref<32x128xbf16, #tpu.memory_space<vmem>>, %arg4: memref<32x1xf32, #tpu.memory_space<vmem>>, %arg5: memref<1x1x32xf32, #tpu.memory_space<vmem>>, %arg6: memref<32x1xf32, #tpu.memory_space<vmem>>) attributes {dimension_semantics = [#tpu.dimension_semantics<parallel>, #tpu.dimension_semantics<arbitrary>], iteration_bounds = array<i64: 1, 1>, scalar_prefetch = 0 : i64, scratch_operands = 1 : i64, tpu.core_type = #tpu.core_type<tc>, window_params = [{transform_indices = @transform_0, window_bounds = array<i64: 32, 128>}, {transform_indices = @transform_1, window_bounds = array<i64: 32, 128>}, {transform_indices = @transform_2, window_bounds = array<i64: 32, 1>}, {transform_indices = @transform_3, window_bounds = array<i64: 1, 1, 32>}]} {
    %c0_i32 = arith.constant 0 : i32
    %0 = arith.cmpi eq, %arg1, %c0_i32 : i32
    %1 = arith.extui %0 : i1 to i32
    %c0_i32_0 = arith.constant 0 : i32
    %2 = arith.cmpi ne, %1, %c0_i32_0 : i32
    scf.if %2 {
      %cst_16 = arith.constant 0.000000e+00 : f32
      %22 = vector.broadcast %cst_16 : f32 to vector<32x1xf32>
      %c0_17 = arith.constant 0 : index
      %c0_18 = arith.constant 0 : index
      %23 = vector.load %arg6[%c0_17, %c0_18] : memref<32x1xf32, #tpu.memory_space<vmem>>, vector<32x1xf32>
      tpu.vector_store %arg6[%c0_17, %c0_18], %22 {strides = array<i32>} : memref<32x1xf32, #tpu.memory_space<vmem>>, vector<32x1xf32>,
    } else {
    }
    %c0 = arith.constant 0 : index
    %c0_1 = arith.constant 0 : index
    %3 = vector.load %arg2[%c0, %c0_1] : memref<32x128xbf16, #tpu.memory_space<vmem>>, vector<32x128xbf16>
    %c0_2 = arith.constant 0 : index
    %c0_3 = arith.constant 0 : index
    %4 = vector.load %arg3[%c0_2, %c0_3] : memref<32x128xbf16, #tpu.memory_space<vmem>>, vector<32x128xbf16>
    %cst = arith.constant dense<0.000000e+00> : vector<32x32xf32>
    %5 = tpu.matmul %3, %4, %cst {dimension_numbers = #tpu.dot_dimension_numbers<[1], [1], [0], [0], [0, 0, 1, 0], [], []>} : vector<32x128xbf16>, vector<32x128xbf16>, vector<32x32xf32> -> vector<32x32xf32>
    %cst_4 = arith.constant 14.2857141 : f32
    %6 = vector.broadcast %cst_4 : f32 to vector<32x32xf32>
    %7 = arith.subf %5, %6 : vector<32x32xf32>
    %8 = math.exp %7 : vector<32x32xf32>
    %c0_5 = arith.constant 0 : index
    %c0_6 = arith.constant 0 : index
    %9 = vector.load %arg6[%c0_5, %c0_6] : memref<32x1xf32, #tpu.memory_space<vmem>>, vector<32x1xf32>
    %cst_7 = arith.constant dense<0.000000e+00> : vector<32xf32>
    %10 = vector.multi_reduction <add>, %8, %cst_7 [1] : vector<32x32xf32> to vector<32xf32>
    %11 = vector.shape_cast %10 : vector<32xf32> to vector<32x1xf32>
    %12 = arith.addf %9, %11 : vector<32x1xf32>
    %c0_8 = arith.constant 0 : index
    %c0_9 = arith.constant 0 : index
    %13 = vector.load %arg6[%c0_8, %c0_9] : memref<32x1xf32, #tpu.memory_space<vmem>>, vector<32x1xf32>
    tpu.vector_store %arg6[%c0_8, %c0_9], %12 {strides = array<i32>} : memref<32x1xf32, #tpu.memory_space<vmem>>, vector<32x1xf32>,
    %cst_10 = arith.constant dense<0.000000e+00> : vector<32xf32>
    %14 = vector.multi_reduction <add>, %8, %cst_10 [0] : vector<32x32xf32> to vector<32xf32>
    %15 = vector.shape_cast %14 : vector<32xf32> to vector<1x32xf32>
    %c0_11 = arith.constant 0 : index
    %c0_12 = arith.constant 0 : index
    %c0_13 = arith.constant 0 : index
    %16 = vector.load %arg5[%c0_11, %c0_12, %c0_13] : memref<1x1x32xf32, #tpu.memory_space<vmem>>, vector<1x1x32xf32>
    %17 = vector.shape_cast %16 : vector<1x1x32xf32> to vector<1x32xf32>
    %18 = vector.shape_cast %15 : vector<1x32xf32> to vector<1x1x32xf32>
    tpu.vector_store %arg5[%c0_11, %c0_12, %c0_13], %18 {strides = array<i32>} : memref<1x1x32xf32, #tpu.memory_space<vmem>>, vector<1x1x32xf32>,
    %c0_i32_14 = arith.constant 0 : i32
    %19 = arith.cmpi eq, %arg1, %c0_i32_14 : i32
    %20 = arith.extui %19 : i1 to i32
    %c0_i32_15 = arith.constant 0 : i32
    %21 = arith.cmpi ne, %20, %c0_i32_15 : i32
    scf.if %21 {
      %c0_16 = arith.constant 0 : index
      %c0_17 = arith.constant 0 : index
      %22 = vector.load %arg6[%c0_16, %c0_17] : memref<32x1xf32, #tpu.memory_space<vmem>>, vector<32x1xf32>
      %23 = math.log %22 : vector<32x1xf32>
      %cst_18 = arith.constant 14.2857141 : f32
      %24 = vector.broadcast %cst_18 : f32 to vector<32x1xf32>
      %25 = arith.addf %24, %23 : vector<32x1xf32>
      %c0_19 = arith.constant 0 : index
      %c0_20 = arith.constant 0 : index
      %26 = vector.load %arg4[%c0_19, %c0_20] : memref<32x1xf32, #tpu.memory_space<vmem>>, vector<32x1xf32>
      tpu.vector_store %arg4[%c0_19, %c0_20], %25 {strides = array<i32>} : memref<32x1xf32, #tpu.memory_space<vmem>>, vector<32x1xf32>,
    } else {
    }
    return
  }
  func.func @transform_0(%arg0: i32, %arg1: i32) -> (i32, i32) {
    %c0_i32 = arith.constant 0 : i32
    %c0_i32_0 = arith.constant 0 : i32
    return %arg0, %c0_i32 : i32, i32
  }
  func.func @transform_1(%arg0: i32, %arg1: i32) -> (i32, i32) {
    %c0_i32 = arith.constant 0 : i32
    %c0_i32_0 = arith.constant 0 : i32
    return %arg1, %c0_i32 : i32, i32
  }
  func.func @transform_2(%arg0: i32, %arg1: i32) -> (i32, i32) {
    %c0_i32 = arith.constant 0 : i32
    %c0_i32_0 = arith.constant 0 : i32
    return %arg0, %c0_i32 : i32, i32
  }
  func.func @transform_3(%arg0: i32, %arg1: i32) -> (i32, i32, i32) {
    %c0_i32 = arith.constant 0 : i32
    %c0_i32_0 = arith.constant 0 : i32
    return %arg0, %c0_i32, %arg1 : i32, i32, i32
  }
}

</mosaic_0001>

<llo_original>
// kernel: tpu_custom_call.1
$region0: #{tpu_custom_call.1}
  #allocation0 [shape = 'u32[]', space=smem, size = 0x4, offset = 0x4, fixed_abs, tag = 'smem constant byte address 0x4 - core index']
  #allocation1 [shape = 'u32[144,128]{1,0:T(1,128)}', space=vmem, size = 0x12000, scoped, tag = 'internal scratch']
  #allocation2 [shape = 'f32[32,1]{1,0:T(8,128)}', space=vmem, size = 0x4000, scoped, tag = 'scratch operand']
  %s0 = inlined_call_operand.hbm [shape: bf16[32,128], index: 0, kind: input, shape index: {}]
  %s1 = inlined_call_operand.hbm [shape: bf16[32,128], index: 1, kind: input, shape index: {}]
  %s2 = inlined_call_operand.vmem [shape: f32[32,1], index: 2, kind: output, shape index: {0}]
  %s3 = inlined_call_operand.hbm [shape: f32[1,1,32], index: 3, kind: output, shape index: {1}]
  %4 = xla_tuple %s2, %s3
  %s5 = sld [smem:[#allocation0]]
  $region42: #{tpu_custom_call.1} parent=0
    _
  %s7 = ssub.s32 1, %s5
  %s8 = scalar_select 0, %s7, %s5
  $region1: #{tpu_custom_call.1} parent=0
    #allocation3 [shape = 'u8[8192]{0}', space=vmem, size = 0x2000, scoped, tag = 'input window, operand 0, single buffered']
    #allocation4 [shape = 's32[1]{0}', space=sflag, size = 0x4, scoped, tag = 'scoped memory for tpu_custom_call.1']
    #allocation5 [shape = 's32[1]{0}', space=sflag, size = 0x4, scoped, tag = 'scoped memory for tpu_custom_call.1']
    #allocation6 [shape = 'u8[8192]{0}', space=vmem, size = 0x2000, scoped, tag = 'input window, operand 1, single buffered']
    #allocation7 [shape = 's32[1]{0}', space=sflag, size = 0x4, scoped, tag = 'scoped memory for tpu_custom_call.1']
    #allocation8 [shape = 'u8[512]{0}', space=vmem, size = 0x400, scoped, tag = 'output window, operand 1, single buffered']
    %9 = vsyncpa [#allocation4], 0
    %10 = vsyncpa [#allocation7], 0
    %11 = vsyncpa [#allocation5], 0
    // Predicated region
    $region2: #{tpu_custom_call.1} parent=1 // pred_check
      _
    $region3: #{tpu_custom_call.1} parent=1 // pred_check_branch
      %13 = sbr.rel (0) target = $region5
    $region4: #{tpu_custom_call.1} parent=1 // pred_region
      %s15 = ssub.s32 256, 256
      %16 = vsyncadd [#allocation4], %s15
      %s17 = sshll.u32 [#allocation3], 4
      %s18 = int_to_ptr.vmem [resolvable:$true] %s17
      %23 = dma.hbm_to_vmem [thread:$0]  %s0, 256, %s18, [#allocation4], 64, 64, 4
    $region5: #{tpu_custom_call.1} parent=1 // pred_fallthru
      _
    // Predicated region
    $region6: #{tpu_custom_call.1} parent=1 // pred_check
      _
    $region7: #{tpu_custom_call.1} parent=1 // pred_check_branch
      %25 = sbr.rel (0) target = $region9
    $region8: #{tpu_custom_call.1} parent=1 // pred_region
      %s27 = ssub.s32 256, 256
      %28 = vsyncadd [#allocation7], %s27
      %s29 = sshll.u32 [#allocation6], 4
      %s30 = int_to_ptr.vmem [resolvable:$true] %s29
      %35 = dma.hbm_to_vmem [thread:$0]  %s1, 256, %s30, [#allocation7], 64, 64, 4
    $region9: #{tpu_custom_call.1} parent=1 // pred_fallthru
      _
    // Predicated region
    $region10: #{tpu_custom_call.1} parent=1 // pred_check
      _
    $region11: #{tpu_custom_call.1} parent=1 // pred_check_branch
      %37 = sbr.rel (0) target = $region13
    $region12: #{tpu_custom_call.1} parent=1 // pred_region
      %38 = dma.done [#allocation4], 256
    $region13: #{tpu_custom_call.1} parent=1 // pred_fallthru
      _
    // Predicated region
    $region14: #{tpu_custom_call.1} parent=1 // pred_check
      _
    $region15: #{tpu_custom_call.1} parent=1 // pred_check_branch
      %40 = sbr.rel (0) target = $region17
    $region16: #{tpu_custom_call.1} parent=1 // pred_region
      %41 = dma.done [#allocation7], 256
    $region17: #{tpu_custom_call.1} parent=1 // pred_fallthru
      _
    %p43 = scmp.eq.s32.totalorder 0, 0
    // Predicated region
    $region18: #{tpu_custom_call.1} parent=1 // pred_check
      %p44 = pneg %p43
    $region19: #{tpu_custom_call.1} parent=1 // pred_check_branch
      %46 = sbr.rel (%p44) target = $region21
    $region20: #{tpu_custom_call.1} parent=1 // pred_region
      %vm47 = vcmask 7168
      %48 = vst.msk [vmem:[#allocation2] sm:$0xff] %vm47, 0.0
      %49 = vst.msk [vmem:[#allocation2 + $0x8] sm:$0xff] %vm47, 0.0
      %50 = vst.msk [vmem:[#allocation2 + $0x10] sm:$0xff] %vm47, 0.0
      %51 = vst.msk [vmem:[#allocation2 + $0x18] sm:$0xff] %vm47, 0.0
    $region21: #{tpu_custom_call.1} parent=1 // pred_fallthru
      _
    %v52 = vld [vmem:[#allocation3] sm:$0xf]
    %v53 = vld [vmem:[#allocation3 + $0x4] sm:$0xf]
    %v54 = vld [vmem:[#allocation3 + $0x8] sm:$0xf]
    %v55 = vld [vmem:[#allocation3 + $0xc] sm:$0xf]
    %v56 = vld [vmem:[#allocation6] sm:$0xf]
    %v57 = vld [vmem:[#allocation6 + $0x4] sm:$0xf]
    %v58 = vld [vmem:[#allocation6 + $0x8] sm:$0xf]
    %v59 = vld [vmem:[#allocation6 + $0xc] sm:$0xf]
    %v64 = vunpack.c.l.b16 %v52
    %v65 = vunpack.c.l.b16 %v53
    %v66 = vunpack.c.l.b16 %v54
    %v67 = vunpack.c.l.b16 %v55
    %v68 = vpack.c.b16 %v65, %v64
    %v69 = vpack.c.b16 %v67, %v66
    %v76 = vunpack.c.l.b16 %v56
    %v77 = vunpack.c.l.b16 %v57
    %v78 = vunpack.c.l.b16 %v58
    %v79 = vunpack.c.l.b16 %v59
    %v80 = vpack.c.b16 %v77, %v76
    %v81 = vpack.c.b16 %v79, %v78
    %84 = vmatprep.subr.bf16.mxu0 0
    %85 = vmatpush1.bf16.xpose.msra.mxu0 0
    %86 = vmatprep.subr.bf16.mxu0 0
    %87 = vmatpush1.bf16.xpose.msra.mxu0 0
    %88 = vmatprep.subr.bf16.mxu0 0
    %89 = vmatpush1.bf16.xpose.msra.mxu0 0
    %90 = vmatprep.subr.bf16.mxu0 0
    %91 = vmatpush1.bf16.xpose.msra.mxu0 0
    %92 = vmatprep.subr.bf16.mxu0 0
    %93 = vmatpush1.bf16.xpose.msra.mxu0 0
    %94 = vmatprep.subr.bf16.mxu0 0
    %95 = vmatpush1.bf16.xpose.msra.mxu0 0
    %96 = vmatprep.subr.bf16.mxu0 0
    %97 = vmatpush1.bf16.xpose.msra.mxu0 %v81
    %98 = vmatprep.subr.bf16.mxu0 0
    %99 = vmatpush1.bf16.xpose.msra.mxu0 %v80
    %100 = vmatprep.subr.bf16.mxu0 0
    %101 = vmatpush2.bf16.xpose.msra.mxu0 0
    %102 = vmatprep.subr.bf16.mxu0 0
    %103 = vmatpush2.bf16.xpose.msra.mxu0 0
    %104 = vmatprep.subr.bf16.mxu0 0
    %105 = vmatpush2.bf16.xpose.msra.mxu0 0
    %106 = vmatprep.subr.bf16.mxu0 0
    %107 = vmatpush2.bf16.xpose.msra.mxu0 0
    %108 = vmatprep.subr.bf16.mxu0 0
    %109 = vmatpush2.bf16.xpose.msra.mxu0 0
    %110 = vmatprep.subr.bf16.mxu0 0
    %111 = vmatpush2.bf16.xpose.msra.mxu0 0
    %112 = vmatprep.subr.bf16.mxu0 0
    %113 = vmatpush2.bf16.xpose.msra.mxu0 0
    %114 = vmatprep.subr.bf16.mxu0 0
    %115 = vmatpush2.bf16.xpose.msra.mxu0 0
    %116 = vmatprep.mubr.bf16.mxu0 0
    %117 = vmatmul.mubr.bf16.gmra.mxu0 %v68
    %v118 = vpop.f32.mrf.mxu0
    %v119 = vadd.f32 0.0, %v118
    %v120 = vpop.f32.mrf.mxu0
    %v121 = vpop.f32.mrf.mxu0
    %v122 = vadd.f32 0.0, %v121
    %v123 = vpop.f32.mrf.mxu0
    %124 = vmatprep.mubr.bf16.mxu0 0
    %125 = vmatmul.mubr.bf16.gmra.mxu0 %v69
    %v126 = vpop.f32.mrf.mxu0
    %v127 = vadd.f32 0.0, %v126
    %v128 = vpop.f32.mrf.mxu0
    %v129 = vpop.f32.mrf.mxu0
    %v130 = vadd.f32 0.0, %v129
    %v131 = vpop.f32.mrf.mxu0
    %132 = vdwg.mxu0
    %v133 = vsub.f32 %v119, 14.285714
    %v134 = vsub.f32 %v122, 14.285714
    %v135 = vsub.f32 %v127, 14.285714
    %v136 = vsub.f32 %v130, 14.285714
    %v137 = vmul.f32 %v133, 1.442695
    %v138 = vpow.pop %v137
    %v139 = vmul.f32 %v134, 1.442695
    %v140 = vpow.pop %v139
    %v141 = vmul.f32 %v135, 1.442695
    %v142 = vpow.pop %v141
    %v143 = vmul.f32 %v136, 1.442695
    %v144 = vpow.pop %v143
    %v145 = vld [vmem:[#allocation2] sm:$0xff]
    %v146 = vld [vmem:[#allocation2 + $0x8] sm:$0xff]
    %v147 = vld [vmem:[#allocation2 + $0x10] sm:$0xff]
    %v148 = vld [vmem:[#allocation2 + $0x18] sm:$0xff]
    %vm149 = vcmask 261120
    %v150 = vsel %vm149, %v138, 0.0
    %151 = vadd.xlane.f32.xlu0 %v150
    %v152 = vpop.xlane.xlu0 %151
    %v153 = vsel %vm149, %v140, 0.0
    %154 = vadd.xlane.f32.xlu0 %v153
    %v155 = vpop.xlane.xlu0 %154
    %v156 = vsel %vm149, %v142, 0.0
    %157 = vadd.xlane.f32.xlu0 %v156
    %v158 = vpop.xlane.xlu0 %157
    %v159 = vsel %vm149, %v144, 0.0
    %160 = vadd.xlane.f32.xlu0 %v159
    %v161 = vpop.xlane.xlu0 %160
    %v162 = vadd.f32 %v145, %v152
    %v163 = vadd.f32 %v146, %v155
    %v164 = vadd.f32 %v147, %v158
    %v165 = vadd.f32 %v148, %v161
    %vm166 = vcmask 7168
    %167 = vst.msk [vmem:[#allocation2] sm:$0xff] %vm166, %v162
    %168 = vst.msk [vmem:[#allocation2 + $0x8] sm:$0xff] %vm166, %v163
    %169 = vst.msk [vmem:[#allocation2 + $0x10] sm:$0xff] %vm166, %v164
    %170 = vst.msk [vmem:[#allocation2 + $0x18] sm:$0xff] %vm166, %v165
    %v171 = vadd.f32 %v150, %v153
    %v172 = vadd.f32 %v171, %v156
    %v173 = vadd.f32 %v172, %v159
    %v174 = vrot.slane %v173, 4
    %v175 = vadd.f32 %v173, %v174
    %v176 = vrot.slane %v175, 2
    %v177 = vadd.f32 %v175, %v176
    %v178 = vrot.slane %v177, 1
    %v179 = vadd.f32 %v177, %v178
    %vm180 = vcmask 253952
    %181 = vst.msk [vmem:[#allocation8] sm:$0x1] %vm180, %v179
    // Predicated region
    $region22: #{tpu_custom_call.1} parent=1 // pred_check
      %p182 = pneg %p43
    $region23: #{tpu_custom_call.1} parent=1 // pred_check_branch
      %184 = sbr.rel (%p182) target = $region25
    $region24: #{tpu_custom_call.1} parent=1 // pred_region
      %v185 = vld [vmem:[#allocation2] sm:$0xff]
      %v186 = vld [vmem:[#allocation2 + $0x8] sm:$0xff]
      %v187 = vld [vmem:[#allocation2 + $0x10] sm:$0xff]
      %v188 = vld [vmem:[#allocation2 + $0x18] sm:$0xff]
      %v189 = vlog2.pop %v185
      %v190 = vmul.f32 %v189, 0.6931472
      %v191 = vlog2.pop %v186
      %v192 = vmul.f32 %v191, 0.6931472
      %v193 = vlog2.pop %v187
      %v194 = vmul.f32 %v193, 0.6931472
      %v195 = vlog2.pop %v188
      %v196 = vmul.f32 %v195, 0.6931472
      %v197 = vadd.f32 %v190, 14.285714
      %v198 = vadd.f32 %v192, 14.285714
      %v199 = vadd.f32 %v194, 14.285714
      %v200 = vadd.f32 %v196, 14.285714
      %201 = vst.msk [vmem:[%s2] sm:$0xff] %vm166, %v197
      %202 = vst.msk [vmem:[%s2 + $0x8] sm:$0xff] %vm166, %v198
      %203 = vst.msk [vmem:[%s2 + $0x10] sm:$0xff] %vm166, %v199
      %204 = vst.msk [vmem:[%s2 + $0x18] sm:$0xff] %vm166, %v200
    $region25: #{tpu_custom_call.1} parent=1 // pred_fallthru
      _
    // Predicated region
    $region26: #{tpu_custom_call.1} parent=1 // pred_check
      _
    $region27: #{tpu_custom_call.1} parent=1 // pred_check_branch
      %206 = sbr.rel (0) target = $region29
    $region28: #{tpu_custom_call.1} parent=1 // pred_region
      _
    $region29: #{tpu_custom_call.1} parent=1 // pred_fallthru
      _
    // Predicated region
    $region30: #{tpu_custom_call.1} parent=1 // pred_check
      _
    $region31: #{tpu_custom_call.1} parent=1 // pred_check_branch
      %208 = sbr.rel (0) target = $region33
    $region32: #{tpu_custom_call.1} parent=1 // pred_region
      %s210 = ssub.s32 16, 16
      %211 = vsyncadd [#allocation5], %s210
      %s213 = sshll.u32 [#allocation8], 4
      %s214 = int_to_ptr.vmem [resolvable:$true] %s213
      %216 = dma.vmem_to_hbm [thread:$0]  %s214, 16, %s3, [#allocation5]
    $region33: #{tpu_custom_call.1} parent=1 // pred_fallthru
      _
    // Predicated region
    $region34: #{tpu_custom_call.1} parent=1 // pred_check
      _
    $region35: #{tpu_custom_call.1} parent=1 // pred_check_branch
      %218 = sbr.rel (0) target = $region37
    $region36: #{tpu_custom_call.1} parent=1 // pred_region
      _
    $region37: #{tpu_custom_call.1} parent=1 // pred_fallthru
      _
    // Predicated region
    $region38: #{tpu_custom_call.1} parent=1 // pred_check
      _
    $region39: #{tpu_custom_call.1} parent=1 // pred_check_branch
      %220 = sbr.rel (0) target = $region41
    $region40: #{tpu_custom_call.1} parent=1 // pred_region
      %221 = dma.done [#allocation5], 16
    $region41: #{tpu_custom_call.1} parent=1 // pred_fallthru
      _
    %222 = vsyncpa [#allocation4], 1
    %223 = vsyncpa [#allocation7], 1
    %224 = vsyncpa [#allocation5], 1

</llo_original>
